<compile_context>
chip_gen: v5e
topology: v5e:2x2
jax: 0.10.0
libtpu: 0.0.40
codegen_flags: <defaults>
</compile_context>

<pallas_src>
import math

import jax
import jax.numpy as jnp
from jax.experimental import pallas as pl
from jax.experimental.pallas import tpu as pltpu


# ---------------------------------------------------------------------------
# Sampling / grouping helpers (plain JAX — data-dependent, not Pallas).
# TODO(synk): FPS (sequential argmax), top-k and index gathers stay in XLA.
# ---------------------------------------------------------------------------
def _gather(points, idx):
    """points [B, N, C], idx [B, ...] -> [B, ..., C]."""
    return jax.vmap(lambda p, i: p[i])(points, idx)


def _farthest_point_sample(coords, s):
    """coords [B, N, 3] -> idx [B, s].  First centroid is index 0 (pointnet2)."""
    B, N, _ = coords.shape

    def body(i, state):
        dists, idxs, last = state
        last_pt = _gather(coords, last[:, None])            # (B, 1, 3)
        d = jnp.sum((coords - last_pt) ** 2, axis=-1)       # (B, N)
        dists = jnp.minimum(dists, d)
        nxt = jnp.argmax(dists, axis=-1).astype(jnp.int32)  # (B,)
        idxs = idxs.at[:, i].set(nxt)
        return dists, idxs, nxt

    dists0 = jnp.full((B, N), 1e10, jnp.float32)
    idxs0 = jnp.zeros((B, s), jnp.int32)
    last0 = jnp.zeros((B,), jnp.int32)
    _, idxs, _ = jax.lax.fori_loop(1, s, body, (dists0, idxs0, last0))
    return idxs


def _knn(coords, new_xyz, k):
    """coords [B, N, 3], new_xyz [B, s, 3] -> idx of k nearest points [B, s, k]."""
    d = (jnp.sum(new_xyz ** 2, -1)[:, :, None]
         + jnp.sum(coords ** 2, -1)[:, None, :]
         - 2.0 * jnp.einsum("bsc,bnc->bsn", new_xyz, coords))
    _, idx = jax.lax.top_k(-d, k)
    return idx


def _sample_and_group(coords, feats, s, k):
    fps_idx = _farthest_point_sample(coords, s)   # [B, s]
    new_xyz = _gather(coords, fps_idx)            # [B, s, 3]
    centers = _gather(feats, fps_idx)             # [B, s, D]
    knn_idx = _knn(coords, new_xyz, k)            # [B, s, k]
    grouped = _gather(feats, knn_idx)             # [B, s, k, D]
    return new_xyz, grouped, centers


# ---------------------------------------------------------------------------
# Fused conv1+BN1+ReLU -> conv2+BN2+ReLU -> max-pool-over-k Pallas kernel.
# Grid = (group_tiles, k).  Output block is resident across the k axis.
# ---------------------------------------------------------------------------
def sg_kernel(grouped_ref, center_ref, w1g_ref, w1c_ref, b1_ref, w2_ref, b2_ref,
              o_ref, cbase_ref):
    # grouped_ref: (1, D, Gt) bf16   — neighbor j's features of this group tile
    # center_ref : (D, Gt)    bf16   — centroid features of this group tile
    # w1g/w1c    : (Cout, D)  bf16   — BN1-folded conv1 weight, split for concat
    # b1/b2      : (Cout, 1)  f32    — folded BN shifts
    # w2         : (Cout, Cout) bf16 — BN2-folded conv2 weight
    # o_ref      : (Cout, Gt) f32    — max-pooled output (accumulated over j)
    # cbase_ref  : (Cout, Gt) f32    — cached center contribution to conv1
    j = pl.program_id(1)

    @pl.when(j == 0)
    def _():
        # Center contribution + folded BN1 shift; invariant over the k axis.
        cbase_ref[...] = (
            jnp.dot(w1c_ref[...], center_ref[...],
                    preferred_element_type=jnp.float32) + b1_ref[...])

    g = grouped_ref[0]                                            # (D, Gt) bf16
    y1 = jnp.maximum(
        jnp.dot(w1g_ref[...], g, preferred_element_type=jnp.float32)
        + cbase_ref[...], 0.0)                                    # (Cout, Gt) f32
    y2 = jnp.maximum(
        jnp.dot(w2_ref[...], y1.astype(w2_ref.dtype),
                preferred_element_type=jnp.float32) + b2_ref[...], 0.0)

    @pl.when(j == 0)
    def _():
        o_ref[...] = y2.astype(o_ref.dtype)

    @pl.when(j > 0)
    def _():
        o_ref[...] = jnp.maximum(o_ref[...], y2.astype(o_ref.dtype))


def sg_forward(x, coords, params, *, s, k=32):
    """x: [B, D, N] (D = in_channels // 2), coords: [B, N, 3]."""
    B, D, N = x.shape
    feats = jnp.transpose(x, (0, 2, 1))                          # [B, N, D]
    new_xyz, grouped, centers = _sample_and_group(coords, feats, s, k)

    w1 = params["w1"]                                            # (Cout, 2D)
    w2 = params["w2"]                                            # (Cout, Cout)
    Cout = w2.shape[0]
    eps = 1e-5

    # Fold eval-mode BN into the conv weights / biases (zero runtime cost).
    scale1 = params["bn1_gamma"] / jnp.sqrt(params["bn1_var"] + eps)
    shift1 = params["bn1_beta"] - params["bn1_mean"] * scale1
    scale2 = params["bn2_gamma"] / jnp.sqrt(params["bn2_var"] + eps)
    shift2 = params["bn2_beta"] - params["bn2_mean"] * scale2

    w1f = w1 * scale1[:, None]                                   # (Cout, 2D)
    w1g = w1f[:, :D]                                             # acts on (g - c)
    w1c = w1f[:, D:] - w1g                                       # acts on c (concat folded)
    b1 = shift1.reshape(Cout, 1)
    w2f = w2 * scale2[:, None]
    b2 = shift2.reshape(Cout, 1)

    # Lane-dense packing: groups on the lane axis, neighbors as a grid axis.
    Gtot = B * s
    Gt = min(Gtot, 512)
    n_tiles = -(-Gtot // Gt)
    Gp = n_tiles * Gt

    grouped_r = jnp.transpose(grouped.reshape(Gtot, k, D), (1, 2, 0))  # (k, D, Gtot)
    center_r = centers.reshape(Gtot, D).T                              # (D, Gtot)
    if Gp != Gtot:
        grouped_r = jnp.pad(grouped_r, ((0, 0), (0, 0), (0, Gp - Gtot)))
        center_r = jnp.pad(center_r, ((0, 0), (0, Gp - Gtot)))

    # bf16 matmul operands (native MXU path), f32 accumulation in-kernel.
    grouped_r = grouped_r.astype(jnp.bfloat16)
    center_r = center_r.astype(jnp.bfloat16)
    w1g_b = w1g.astype(jnp.bfloat16)
    w1c_b = w1c.astype(jnp.bfloat16)
    w2_b = w2f.astype(jnp.bfloat16)

    full = lambda i, j: (0, 0)
    out = pl.pallas_call(
        sg_kernel,
        out_shape=jax.ShapeDtypeStruct((Cout, Gp), jnp.float32),
        grid_spec=pltpu.PrefetchScalarGridSpec(
            num_scalar_prefetch=0,
            grid=(n_tiles, k),                       # reduction (k) axis last
            in_specs=[
                pl.BlockSpec((1, D, Gt), lambda i, j: (j, 0, i)),   # grouped
                pl.BlockSpec((D, Gt), lambda i, j: (0, i)),         # centers
                pl.BlockSpec((Cout, D), full),                      # w1g
                pl.BlockSpec((Cout, D), full),                      # w1c
                pl.BlockSpec((Cout, 1), full),                      # b1
                pl.BlockSpec((Cout, Cout), full),                   # w2
                pl.BlockSpec((Cout, 1), full),                      # b2
            ],
            out_specs=pl.BlockSpec((Cout, Gt), lambda i, j: (0, i)),
            scratch_shapes=[pltpu.VMEM((Cout, Gt), jnp.float32)],
        ),
        compiler_params=pltpu.CompilerParams(
            dimension_semantics=("parallel", "arbitrary")),
    )(grouped_r, center_r, w1g_b, w1c_b, b1, w2_b, b2)

    new_feature = out[:, :Gtot].reshape(Cout, B, s).transpose(1, 0, 2)  # (B, Cout, s)
    return new_xyz, new_feature


# ---------------------------------------------------------------------------
# Pure-JAX reference of the same forward (eval-mode BN), f32 throughout.
# ---------------------------------------------------------------------------
def sg_reference(x, coords, params, *, s, k=32):
    B, D, N = x.shape
    feats = jnp.transpose(x, (0, 2, 1))
    new_xyz, grouped, centers = _sample_and_group(coords, feats, s, k)
    agg = jnp.concatenate(
        [grouped - centers[:, :, None, :],
         jnp.broadcast_to(centers[:, :, None, :], grouped.shape)], axis=-1)
    eps = 1e-5
    f = agg.reshape(B * s, k, 2 * D)                                   # (G, k, 2D)
    y1 = jnp.einsum("oc,gkc->gko", params["w1"], f)
    y1 = (y1 - params["bn1_mean"]) / jnp.sqrt(params["bn1_var"] + eps)
    y1 = jax.nn.relu(y1 * params["bn1_gamma"] + params["bn1_beta"])
    y2 = jnp.einsum("oc,gkc->gko", params["w2"], y1)
    y2 = (y2 - params["bn2_mean"]) / jnp.sqrt(params["bn2_var"] + eps)
    y2 = jax.nn.relu(y2 * params["bn2_gamma"] + params["bn2_beta"])
    pooled = jnp.max(y2, axis=1)                                       # (G, Cout)
    new_feature = pooled.reshape(B, s, -1).transpose(0, 2, 1)          # (B, Cout, s)
    return new_xyz, new_feature


def init_params(key, in_channels, out_channels):
    k1, k2, k3, k4, k5, k6 = jax.random.split(key, 6)
    a1 = 1.0 / math.sqrt(in_channels)
    a2 = 1.0 / math.sqrt(out_channels)
    return {
        "w1": jax.random.uniform(k1, (out_channels, in_channels), jnp.float32, -a1, a1),
        "w2": jax.random.uniform(k2, (out_channels, out_channels), jnp.float32, -a2, a2),
        "bn1_gamma": jax.random.uniform(k3, (out_channels,), jnp.float32, 0.5, 1.5),
        "bn1_beta": jax.random.normal(k4, (out_channels,), jnp.float32) * 0.1,
        "bn1_mean": jnp.zeros((out_channels,), jnp.float32),
        "bn1_var": jnp.ones((out_channels,), jnp.float32),
        "bn2_gamma": jax.random.uniform(k5, (out_channels,), jnp.float32, 0.5, 1.5),
        "bn2_beta": jax.random.normal(k6, (out_channels,), jnp.float32) * 0.1,
        "bn2_mean": jnp.zeros((out_channels,), jnp.float32),
        "bn2_var": jnp.ones((out_channels,), jnp.float32),
    }


if __name__ == "__main__":
    # SG(s=16, in_channels=64, out_channels=64); x has in_channels//2 = 32 chans.
    B, in_ch, out_ch, N, s, k = 2, 64, 64, 64, 16, 32
    D = in_ch // 2
    key = jax.random.PRNGKey(0)
    kx, kc, kp = jax.random.split(key, 3)
    x = jax.random.normal(kx, (B, D, N), dtype=jnp.float32)
    coords = jax.random.normal(kc, (B, N, 3), dtype=jnp.float32)
    params = init_params(kp, in_ch, out_ch)

    new_xyz, new_feat = sg_forward(x, coords, params, s=s, k=k)
    new_feat = jax.block_until_ready(new_feat)

    ref_xyz, ref_feat = sg_reference(x, coords, params, s=s, k=k)
    assert new_xyz.shape == (B, s, 3)
    assert new_feat.shape == (B, out_ch, s)
    assert jnp.allclose(new_xyz, ref_xyz), "sampled coords mismatch"
    err = float(jnp.max(jnp.abs(new_feat - ref_feat)))
    assert jnp.allclose(new_feat, ref_feat, atol=2e-2, rtol=2e-2), f"max err {err}"

    print("KERNEL_OK")
</pallas_src>

<mosaic_0001>
module attributes {stable_mosaic.version = 11 : i64} {
  func.func @sg_kernel(%arg0: i32, %arg1: i32, %arg2: memref<1x32x32xbf16, #tpu.memory_space<vmem>>, %arg3: memref<32x32xbf16, #tpu.memory_space<vmem>>, %arg4: memref<64x32xbf16, #tpu.memory_space<vmem>>, %arg5: memref<64x32xbf16, #tpu.memory_space<vmem>>, %arg6: memref<64x1xf32, #tpu.memory_space<vmem>>, %arg7: memref<64x64xbf16, #tpu.memory_space<vmem>>, %arg8: memref<64x1xf32, #tpu.memory_space<vmem>>, %arg9: memref<64x32xf32, #tpu.memory_space<vmem>>, %arg10: memref<64x32xf32, #tpu.memory_space<vmem>>) attributes {dimension_semantics = [#tpu.dimension_semantics<parallel>, #tpu.dimension_semantics<arbitrary>], iteration_bounds = array<i64: 1, 32>, scalar_prefetch = 0 : i64, scratch_operands = 1 : i64, tpu.core_type = #tpu.core_type<tc>, window_params = [{transform_indices = @transform_0, window_bounds = array<i64: 1, 32, 32>}, {transform_indices = @transform_1, window_bounds = array<i64: 32, 32>}, {pipeline_mode = #tpu.pipeline_mode<synchronous>, transform_indices = @transform_2, window_bounds = array<i64: 64, 32>}, {pipeline_mode = #tpu.pipeline_mode<synchronous>, transform_indices = @transform_3, window_bounds = array<i64: 64, 32>}, {pipeline_mode = #tpu.pipeline_mode<synchronous>, transform_indices = @transform_4, window_bounds = array<i64: 64, 1>}, {pipeline_mode = #tpu.pipeline_mode<synchronous>, transform_indices = @transform_5, window_bounds = array<i64: 64, 64>}, {pipeline_mode = #tpu.pipeline_mode<synchronous>, transform_indices = @transform_6, window_bounds = array<i64: 64, 1>}, {transform_indices = @transform_7, window_bounds = array<i64: 64, 32>}]} {
    %c0_i32 = arith.constant 0 : i32
    %0 = arith.cmpi eq, %arg1, %c0_i32 : i32
    %1 = arith.extui %0 : i1 to i32
    %c0_i32_0 = arith.constant 0 : i32
    %2 = arith.cmpi ne, %1, %c0_i32_0 : i32
    scf.if %2 {
      %c0_18 = arith.constant 0 : index
      %c0_19 = arith.constant 0 : index
      %25 = vector.load %arg5[%c0_18, %c0_19] : memref<64x32xbf16, #tpu.memory_space<vmem>>, vector<64x32xbf16>
      %c0_20 = arith.constant 0 : index
      %c0_21 = arith.constant 0 : index
      %26 = vector.load %arg3[%c0_20, %c0_21] : memref<32x32xbf16, #tpu.memory_space<vmem>>, vector<32x32xbf16>
      %cst_22 = arith.constant dense<0.000000e+00> : vector<64x32xf32>
      %27 = tpu.matmul %25, %26, %cst_22 {dimension_numbers = #tpu.dot_dimension_numbers<[1], [0], [0], [1], [0, 0, 1, 1], [], []>} : vector<64x32xbf16>, vector<32x32xbf16>, vector<64x32xf32> -> vector<64x32xf32>
      %c0_23 = arith.constant 0 : index
      %c0_24 = arith.constant 0 : index
      %28 = vector.load %arg6[%c0_23, %c0_24] : memref<64x1xf32, #tpu.memory_space<vmem>>, vector<64x1xf32>
      %29 = vector.broadcast %28 : vector<64x1xf32> to vector<64x32xf32>
      %30 = arith.addf %27, %29 : vector<64x32xf32>
      %c0_25 = arith.constant 0 : index
      %c0_26 = arith.constant 0 : index
      %31 = vector.load %arg10[%c0_25, %c0_26] : memref<64x32xf32, #tpu.memory_space<vmem>>, vector<64x32xf32>
      tpu.vector_store %arg10[%c0_25, %c0_26], %30 {strides = array<i32>} : memref<64x32xf32, #tpu.memory_space<vmem>>, vector<64x32xf32>,
    } else {
    }
    %c0 = arith.constant 0 : index
    %c0_1 = arith.constant 0 : index
    %c0_2 = arith.constant 0 : index
    %3 = vector.load %arg2[%c0, %c0_1, %c0_2] : memref<1x32x32xbf16, #tpu.memory_space<vmem>>, vector<1x32x32xbf16>
    %4 = vector.shape_cast %3 : vector<1x32x32xbf16> to vector<32x32xbf16>
    %c0_3 = arith.constant 0 : index
    %c0_4 = arith.constant 0 : index
    %5 = vector.load %arg4[%c0_3, %c0_4] : memref<64x32xbf16, #tpu.memory_space<vmem>>, vector<64x32xbf16>
    %cst = arith.constant dense<0.000000e+00> : vector<64x32xf32>
    %6 = tpu.matmul %5, %4, %cst {dimension_numbers = #tpu.dot_dimension_numbers<[1], [0], [0], [1], [0, 0, 1, 1], [], []>} : vector<64x32xbf16>, vector<32x32xbf16>, vector<64x32xf32> -> vector<64x32xf32>
    %c0_5 = arith.constant 0 : index
    %c0_6 = arith.constant 0 : index
    %7 = vector.load %arg10[%c0_5, %c0_6] : memref<64x32xf32, #tpu.memory_space<vmem>>, vector<64x32xf32>
    %8 = arith.addf %6, %7 : vector<64x32xf32>
    %cst_7 = arith.constant 0.000000e+00 : f32
    %9 = vector.broadcast %cst_7 : f32 to vector<64x32xf32>
    %10 = arith.maximumf %8, %9 : vector<64x32xf32>
    %c0_8 = arith.constant 0 : index
    %c0_9 = arith.constant 0 : index
    %11 = vector.load %arg7[%c0_8, %c0_9] : memref<64x64xbf16, #tpu.memory_space<vmem>>, vector<64x64xbf16>
    %12 = arith.truncf %10 : vector<64x32xf32> to vector<64x32xbf16>
    %cst_10 = arith.constant dense<0.000000e+00> : vector<64x32xf32>
    %13 = tpu.matmul %11, %12, %cst_10 {dimension_numbers = #tpu.dot_dimension_numbers<[1], [0], [0], [1], [0, 0, 1, 1], [], []>} : vector<64x64xbf16>, vector<64x32xbf16>, vector<64x32xf32> -> vector<64x32xf32>
    %c0_11 = arith.constant 0 : index
    %c0_12 = arith.constant 0 : index
    %14 = vector.load %arg8[%c0_11, %c0_12] : memref<64x1xf32, #tpu.memory_space<vmem>>, vector<64x1xf32>
    %15 = vector.broadcast %14 : vector<64x1xf32> to vector<64x32xf32>
    %16 = arith.addf %13, %15 : vector<64x32xf32>
    %cst_13 = arith.constant 0.000000e+00 : f32
    %17 = vector.broadcast %cst_13 : f32 to vector<64x32xf32>
    %18 = arith.maximumf %16, %17 : vector<64x32xf32>
    %c0_i32_14 = arith.constant 0 : i32
    %19 = arith.cmpi eq, %arg1, %c0_i32_14 : i32
    %20 = arith.extui %19 : i1 to i32
    %c0_i32_15 = arith.constant 0 : i32
    %21 = arith.cmpi ne, %20, %c0_i32_15 : i32
    scf.if %21 {
      %c0_18 = arith.constant 0 : index
      %c0_19 = arith.constant 0 : index
      %25 = vector.load %arg9[%c0_18, %c0_19] : memref<64x32xf32, #tpu.memory_space<vmem>>, vector<64x32xf32>
      tpu.vector_store %arg9[%c0_18, %c0_19], %18 {strides = array<i32>} : memref<64x32xf32, #tpu.memory_space<vmem>>, vector<64x32xf32>,
    } else {
    }
    %c0_i32_16 = arith.constant 0 : i32
    %22 = arith.cmpi sgt, %arg1, %c0_i32_16 : i32
    %23 = arith.extui %22 : i1 to i32
    %c0_i32_17 = arith.constant 0 : i32
    %24 = arith.cmpi ne, %23, %c0_i32_17 : i32
    scf.if %24 {
      %c0_18 = arith.constant 0 : index
      %c0_19 = arith.constant 0 : index
      %25 = vector.load %arg9[%c0_18, %c0_19] : memref<64x32xf32, #tpu.memory_space<vmem>>, vector<64x32xf32>
      %26 = arith.maximumf %25, %18 : vector<64x32xf32>
      %c0_20 = arith.constant 0 : index
      %c0_21 = arith.constant 0 : index
      %27 = vector.load %arg9[%c0_20, %c0_21] : memref<64x32xf32, #tpu.memory_space<vmem>>, vector<64x32xf32>
      tpu.vector_store %arg9[%c0_20, %c0_21], %26 {strides = array<i32>} : memref<64x32xf32, #tpu.memory_space<vmem>>, vector<64x32xf32>,
    } else {
    }
    return
  }
  func.func @transform_0(%arg0: i32, %arg1: i32) -> (i32, i32, i32) {
    %c0_i32 = arith.constant 0 : i32
    %c0_i32_0 = arith.constant 0 : i32
    return %arg1, %c0_i32, %arg0 : i32, i32, i32
  }
  func.func @transform_1(%arg0: i32, %arg1: i32) -> (i32, i32) {
    %c0_i32 = arith.constant 0 : i32
    %c0_i32_0 = arith.constant 0 : i32
    return %c0_i32, %arg0 : i32, i32
  }
  func.func @transform_2(%arg0: i32, %arg1: i32) -> (i32, i32) {
    %c0_i32 = arith.constant 0 : i32
    %c0_i32_0 = arith.constant 0 : i32
    %c0_i32_1 = arith.constant 0 : i32
    return %c0_i32, %c0_i32_0 : i32, i32
  }
  func.func @transform_3(%arg0: i32, %arg1: i32) -> (i32, i32) {
    %c0_i32 = arith.constant 0 : i32
    %c0_i32_0 = arith.constant 0 : i32
    %c0_i32_1 = arith.constant 0 : i32
    return %c0_i32, %c0_i32_0 : i32, i32
  }
  func.func @transform_4(%arg0: i32, %arg1: i32) -> (i32, i32) {
    %c0_i32 = arith.constant 0 : i32
    %c0_i32_0 = arith.constant 0 : i32
    %c0_i32_1 = arith.constant 0 : i32
    return %c0_i32, %c0_i32_0 : i32, i32
  }
  func.func @transform_5(%arg0: i32, %arg1: i32) -> (i32, i32) {
    %c0_i32 = arith.constant 0 : i32
    %c0_i32_0 = arith.constant 0 : i32
    %c0_i32_1 = arith.constant 0 : i32
    return %c0_i32, %c0_i32_0 : i32, i32
  }
  func.func @transform_6(%arg0: i32, %arg1: i32) -> (i32, i32) {
    %c0_i32 = arith.constant 0 : i32
    %c0_i32_0 = arith.constant 0 : i32
    %c0_i32_1 = arith.constant 0 : i32
    return %c0_i32, %c0_i32_0 : i32, i32
  }
  func.func @transform_7(%arg0: i32, %arg1: i32) -> (i32, i32) {
    %c0_i32 = arith.constant 0 : i32
    %c0_i32_0 = arith.constant 0 : i32
    return %c0_i32, %arg0 : i32, i32
  }
}

</mosaic_0001>

<llo_original>
// kernel: tpu_custom_call.1
$region0: #{tpu_custom_call.1}
  #allocation0 [shape = 'u32[]', space=smem, size = 0x4, offset = 0x4, fixed_abs, tag = 'smem constant byte address 0x4 - core index']
  #allocation1 [shape = 'u32[72,128]{1,0:T(1,128)}', space=vmem, size = 0x9000, scoped, tag = 'internal scratch']
  #allocation2 [shape = 'f32[64,32]{1,0:T(8,128)}', space=vmem, size = 0x8000, scoped, tag = 'scratch operand']
  %s0 = inlined_call_operand.hbm [shape: bf16[32,32,32], index: 0, kind: input, shape index: {}]
  %s1 = inlined_call_operand.vmem [shape: bf16[32,32], index: 1, kind: input, shape index: {}]
  %s2 = inlined_call_operand.vmem [shape: bf16[64,32], index: 2, kind: input, shape index: {}]
  %s3 = inlined_call_operand.vmem [shape: bf16[64,32], index: 3, kind: input, shape index: {}]
  %s4 = inlined_call_operand.vmem [shape: f32[64,1], index: 4, kind: input, shape index: {}]
  %s5 = inlined_call_operand.vmem [shape: bf16[64,64], index: 5, kind: input, shape index: {}]
  %s6 = inlined_call_operand.vmem [shape: f32[64,1], index: 6, kind: input, shape index: {}]
  %s7 = inlined_call_operand.vmem [shape: f32[64,32], index: 7, kind: output, shape index: {}]
  %s8 = sld [smem:[#allocation0]]
  $region77: #{tpu_custom_call.1} parent=0
    _
  %s10 = ssub.s32 1, %s8
  %s11 = scalar_select 0, %s10, %s8
  $region1: #{tpu_custom_call.1} parent=0
    #allocation3 [shape = 'u8[16384]{0}', space=vmem, size = 0x4000, scoped, tag = 'input window, operand 0']
    #allocation4 [shape = 's32[2]{0}', space=sflag, size = 0x8, scoped, tag = 'scoped memory for tpu_custom_call.1']
    %12 = vsyncpa [#allocation4], 0
    %s13 = scalar_lea.sflag [#allocation4], 1
    %14 = vsyncpa %s13, 0
    loop: start=0, step=1, limit=34
    $region2: #{tpu_custom_call.1} parent=1 // loop_pre_header
      _
    $region3: #{tpu_custom_call.1} parent=1 // loop_header
      %s16 = sphi 0, %s20
      %p17 = scmp.ge.s32.totalorder %s16, 34
      %s23 = sphi 0, %s35
      %s24 = sphi 0, %s31
      %s25 = sphi 0, %s23
      %s26 = sphi 0, %s24
      %s27 = sphi 0, %s25
      %s28 = sphi 0, %s26
      %s40 = sphi 0, %s42
      %s43 = sphi 0, %s40
      %s44 = sphi 0, %s43
      %s60 = sphi 0, %s44
      %s66 = sphi 0, %s68
      %s69 = sphi 0, %s66
      %s70 = sphi 0, %s69
      %s86 = sphi 0, %s70
      %s90 = sphi 0, %s90
      %s92 = sphi 0, %s90
      %s93 = sphi 0, %s92
      %s107 = sphi 0, %s93
      %s111 = sphi 0, %s111
      %s113 = sphi 0, %s111
      %s114 = sphi 0, %s113
      %s128 = sphi 0, %s114
      %s132 = sphi 0, %s132
      %s134 = sphi 0, %s132
      %s135 = sphi 0, %s134
      %s149 = sphi 0, %s135
      %s153 = sphi 0, %s153
      %s155 = sphi 0, %s153
      %s156 = sphi 0, %s155
      %s170 = sphi 0, %s156
      %s174 = sphi 0, %s174
      %s176 = sphi 0, %s174
      %s177 = sphi 0, %s176
      %s191 = sphi 0, %s177
      %s197 = sphi 0, %s199
      %s200 = sphi 0, %s197
      %s201 = sphi 0, %s200
      %s217 = sphi 0, %s201
    $region4: #{tpu_custom_call.1} parent=1 // loop_header_branch
      %19 = sbr.rel (%p17) target = $region8
    $region5: #{tpu_custom_call.1} parent=1 // loop_body
      %s21 = ssub.s32 %s16, 1
      %s22 = ssub.s32 %s16, 2
      %s29 = sadd.s32 1, %s24
      %p30 = scmp.ge.s32.totalorder %s29, 32
      %s31 = scalar_select %p30, 0, %s29
      %s32 = sadd.s32 1, %s23
      %s33 = scalar_select %p30, %s32, %s23
      %p34 = scmp.ge.s32.totalorder %s33, 1
      %s35 = scalar_select %p34, 0, %s33
      %s36 = ssub.s32 %s24, %s31
      %s37 = ssub.s32 %s23, %s35
      %s38 = sor.u32 %s36, %s37
      %p39 = scmp.eq.s32.totalorder %s38, 0
      %s41 = sadd.s32 %s40, 1
      %s42 = scalar_select %p39, %s40, %s41
      %p45 = pneg %p39
      %p46 = scmp.eq.s32.totalorder %s16, 31
      %p47 = por %p45, %p46
      %p48 = scmp.ne.s32.totalorder %s40, %s43
      %p49 = scmp.eq.s32.totalorder %s16, 0
      %p50 = por %p48, %p49
      %p51 = scmp.ne.s32.totalorder %s40, %s43
      %p52 = scmp.eq.s32.totalorder %s21, 31
      %p53 = por %p51, %p52
      %p54 = scmp.ne.s32.totalorder %s43, %s44
      %p55 = scmp.eq.s32.totalorder %s21, 0
      %p56 = por %p54, %p55
      %p57 = scmp.ne.s32.totalorder %s43, %s44
      %p58 = scmp.eq.s32.totalorder %s22, 31
      %p59 = por %p57, %p58
      %p61 = scmp.ne.s32.totalorder %s44, %s60
      %p62 = scmp.eq.s32.totalorder %s22, 0
      %p63 = por %p61, %p62
      %s64 = ssub.s32 %s23, %s35
      %p65 = scmp.eq.s32.totalorder %s64, 0
      %s67 = sadd.s32 %s66, 1
      %s68 = scalar_select %p65, %s66, %s67
      %p71 = pneg %p65
      %p72 = scmp.eq.s32.totalorder %s16, 31
      %p73 = por %p71, %p72
      %p74 = scmp.ne.s32.totalorder %s66, %s69
      %p75 = scmp.eq.s32.totalorder %s16, 0
      %p76 = por %p74, %p75
      %p77 = scmp.ne.s32.totalorder %s66, %s69
      %p78 = scmp.eq.s32.totalorder %s21, 31
      %p79 = por %p77, %p78
      %p80 = scmp.ne.s32.totalorder %s69, %s70
      %p81 = scmp.eq.s32.totalorder %s21, 0
      %p82 = por %p80, %p81
      %p83 = scmp.ne.s32.totalorder %s69, %s70
      %p84 = scmp.eq.s32.totalorder %s22, 31
      %p85 = por %p83, %p84
      %p87 = scmp.ne.s32.totalorder %s70, %s86
      %p88 = scmp.eq.s32.totalorder %s22, 0
      %p89 = por %p87, %p88
      %s91 = sadd.s32 %s90, 1
      %p94 = scmp.eq.s32.totalorder %s16, 31
      %p95 = scmp.ne.s32.totalorder %s90, %s92
      %p96 = scmp.eq.s32.totalorder %s16, 0
      %p97 = por %p95, %p96
      %p98 = scmp.ne.s32.totalorder %s90, %s92
      %p99 = scmp.eq.s32.totalorder %s21, 31
      %p100 = por %p98, %p99
      %p101 = scmp.ne.s32.totalorder %s92, %s93
      %p102 = scmp.eq.s32.totalorder %s21, 0
      %p103 = por %p101, %p102
      %p104 = scmp.ne.s32.totalorder %s92, %s93
      %p105 = scmp.eq.s32.totalorder %s22, 31
      %p106 = por %p104, %p105
      %p108 = scmp.ne.s32.totalorder %s93, %s107
      %p109 = scmp.eq.s32.totalorder %s22, 0
      %p110 = por %p108, %p109
      %s112 = sadd.s32 %s111, 1
      %p115 = scmp.eq.s32.totalorder %s16, 31
      %p116 = scmp.ne.s32.totalorder %s111, %s113
      %p117 = scmp.eq.s32.totalorder %s16, 0
      %p118 = por %p116, %p117
      %p119 = scmp.ne.s32.totalorder %s111, %s113
      %p120 = scmp.eq.s32.totalorder %s21, 31
      %p121 = por %p119, %p120
      %p122 = scmp.ne.s32.totalorder %s113, %s114
      %p123 = scmp.eq.s32.totalorder %s21, 0
      %p124 = por %p122, %p123
      %p125 = scmp.ne.s32.totalorder %s113, %s114
      %p126 = scmp.eq.s32.totalorder %s22, 31
      %p127 = por %p125, %p126
      %p129 = scmp.ne.s32.totalorder %s114, %s128
      %p130 = scmp.eq.s32.totalorder %s22, 0
      %p131 = por %p129, %p130
      %s133 = sadd.s32 %s132, 1
      %p136 = scmp.eq.s32.totalorder %s16, 31
      %p137 = scmp.ne.s32.totalorder %s132, %s134
      %p138 = scmp.eq.s32.totalorder %s16, 0
      %p139 = por %p137, %p138
      %p140 = scmp.ne.s32.totalorder %s132, %s134
      %p141 = scmp.eq.s32.totalorder %s21, 31
      %p142 = por %p140, %p141
      %p143 = scmp.ne.s32.totalorder %s134, %s135
      %p144 = scmp.eq.s32.totalorder %s21, 0
      %p145 = por %p143, %p144
      %p146 = scmp.ne.s32.totalorder %s134, %s135
      %p147 = scmp.eq.s32.totalorder %s22, 31
      %p148 = por %p146, %p147
      %p150 = scmp.ne.s32.totalorder %s135, %s149
      %p151 = scmp.eq.s32.totalorder %s22, 0
      %p152 = por %p150, %p151
      %s154 = sadd.s32 %s153, 1
      %p157 = scmp.eq.s32.totalorder %s16, 31
      %p158 = scmp.ne.s32.totalorder %s153, %s155
      %p159 = scmp.eq.s32.totalorder %s16, 0
      %p160 = por %p158, %p159
      %p161 = scmp.ne.s32.totalorder %s153, %s155
      %p162 = scmp.eq.s32.totalorder %s21, 31
      %p163 = por %p161, %p162
      %p164 = scmp.ne.s32.totalorder %s155, %s156
      %p165 = scmp.eq.s32.totalorder %s21, 0
      %p166 = por %p164, %p165
      %p167 = scmp.ne.s32.totalorder %s155, %s156
      %p168 = scmp.eq.s32.totalorder %s22, 31
      %p169 = por %p167, %p168
      %p171 = scmp.ne.s32.totalorder %s156, %s170
      %p172 = scmp.eq.s32.totalorder %s22, 0
      %p173 = por %p171, %p172
      %s175 = sadd.s32 %s174, 1
      %p178 = scmp.eq.s32.totalorder %s16, 31
      %p179 = scmp.ne.s32.totalorder %s174, %s176
      %p180 = scmp.eq.s32.totalorder %s16, 0
      %p181 = por %p179, %p180
      %p182 = scmp.ne.s32.totalorder %s174, %s176
      %p183 = scmp.eq.s32.totalorder %s21, 31
      %p184 = por %p182, %p183
      %p185 = scmp.ne.s32.totalorder %s176, %s177
      %p186 = scmp.eq.s32.totalorder %s21, 0
      %p187 = por %p185, %p186
      %p188 = scmp.ne.s32.totalorder %s176, %s177
      %p189 = scmp.eq.s32.totalorder %s22, 31
      %p190 = por %p188, %p189
      %p192 = scmp.ne.s32.totalorder %s177, %s191
      %p193 = scmp.eq.s32.totalorder %s22, 0
      %p194 = por %p192, %p193
      %s195 = ssub.s32 %s23, %s35
      %p196 = scmp.eq.s32.totalorder %s195, 0
      %s198 = sadd.s32 %s197, 1
      %s199 = scalar_select %p196, %s197, %s198
      %p202 = pneg %p196
      %p203 = scmp.eq.s32.totalorder %s16, 31
      %p204 = por %p202, %p203
      %p205 = scmp.ne.s32.totalorder %s197, %s200
      %p206 = scmp.eq.s32.totalorder %s16, 0
      %p207 = por %p205, %p206
      %p208 = scmp.ne.s32.totalorder %s197, %s200
      %p209 = scmp.eq.s32.totalorder %s21, 31
      %p210 = por %p208, %p209
      %p211 = scmp.ne.s32.totalorder %s200, %s201
      %p212 = scmp.eq.s32.totalorder %s21, 0
      %p213 = por %p211, %p212
      %p214 = scmp.ne.s32.totalorder %s200, %s201
      %p215 = scmp.eq.s32.totalorder %s22, 31
      %p216 = por %p214, %p215
      %p218 = scmp.ne.s32.totalorder %s201, %s217
      %p219 = scmp.eq.s32.totalorder %s22, 0
      %p220 = por %p218, %p219
      %p221 = scmp.le.s32.totalorder 1, %s16
      %p222 = scmp.lt.s32.totalorder %s16, 33
      %p223 = pnand %p221, %p222
      %p224 = pneg %p223
      // Predicated region
      $region9: #{tpu_custom_call.1} parent=5 // pred_check
        _
      $region10: #{tpu_custom_call.1} parent=5 // pred_check_branch
        %226 = sbr.rel (%p223) target = $region12
      $region11: #{tpu_custom_call.1} parent=5 // pred_region
        %s227 = ssub.s32 %s16, 1
        // Predicated region
        $region13: #{tpu_custom_call.1} parent=11 // pred_check
          %p228 = pneg %p82
        $region14: #{tpu_custom_call.1} parent=11 // pred_check_branch
          %230 = sbr.rel (%p228) target = $region16
        $region15: #{tpu_custom_call.1} parent=11 // pred_region
          %p231 = scmp.lt.s32.totalorder %s25, 0
          %s232 = scalar_select %p231, %s25, 0
          %s233 = smul.addr %s232, 4
          %s234 = scalar_lea.vmem %s1, %s233
        $region16: #{tpu_custom_call.1} parent=11 // pred_fallthru
          _
        // Predicated region
        $region17: #{tpu_custom_call.1} parent=11 // pred_check
          %p235 = pneg %p103
        $region18: #{tpu_custom_call.1} parent=11 // pred_check_branch
          %237 = sbr.rel (%p235) target = $region20
        $region19: #{tpu_custom_call.1} parent=11 // pred_region
          _
        $region20: #{tpu_custom_call.1} parent=11 // pred_fallthru
          _
        // Predicated region
        $region21: #{tpu_custom_call.1} parent=11 // pred_check
          %p238 = pneg %p124
        $region22: #{tpu_custom_call.1} parent=11 // pred_check_branch
          %240 = sbr.rel (%p238) target = $region24
        $region23: #{tpu_custom_call.1} parent=11 // pred_region
          _
        $region24: #{tpu_custom_call.1} parent=11 // pred_fallthru
          _
        // Predicated region
        $region25: #{tpu_custom_call.1} parent=11 // pred_check
          %p241 = pneg %p145
        $region26: #{tpu_custom_call.1} parent=11 // pred_check_branch
          %243 = sbr.rel (%p241) target = $region28
        $region27: #{tpu_custom_call.1} parent=11 // pred_region
          _
        $region28: #{tpu_custom_call.1} parent=11 // pred_fallthru
          _
        // Predicated region
        $region29: #{tpu_custom_call.1} parent=11 // pred_check
          %p244 = pneg %p166
        $region30: #{tpu_custom_call.1} parent=11 // pred_check_branch
          %246 = sbr.rel (%p244) target = $region32
        $region31: #{tpu_custom_call.1} parent=11 // pred_region
          _
        $region32: #{tpu_custom_call.1} parent=11 // pred_fallthru
          _
        // Predicated region
        $region33: #{tpu_custom_call.1} parent=11 // pred_check
          %p247 = pneg %p187
        $region34: #{tpu_custom_call.1} parent=11 // pred_check_branch
          %249 = sbr.rel (%p247) target = $region36
        $region35: #{tpu_custom_call.1} parent=11 // pred_region
          _
        $region36: #{tpu_custom_call.1} parent=11 // pred_fallthru
          _
      $region12: #{tpu_custom_call.1} parent=5 // pred_fallthru
        _
      %p250 = scmp.lt.s32.totalorder %s16, 32
      // Predicated region
      $region37: #{tpu_custom_call.1} parent=5 // pred_check
        %p251 = pneg %p250
      $region38: #{tpu_custom_call.1} parent=5 // pred_check_branch
        %253 = sbr.rel (%p251) target = $region40
      $region39: #{tpu_custom_call.1} parent=5 // pred_region
        // Predicated region
        $region41: #{tpu_custom_call.1} parent=39 // pred_check
          %p254 = pneg %p50
        $region42: #{tpu_custom_call.1} parent=39 // pred_check_branch
          %256 = sbr.rel (%p254) target = $region44
        $region43: #{tpu_custom_call.1} parent=39 // pred_region
          %s257 = sand.u32 %s40, 1
          %s258 = scalar_lea.sflag [#allocation4], %s257
          %s259 = sand.u32 %s40, 1
          %s260 = smul.addr %s259, 16
          %s261 = scalar_lea.vmem [#allocation3], %s260
          %263 = vsyncadd %s258, 0
          %s264 = smul.addr %s24, 4
          %s265 = sadd.s32 %s23, %s264
          %s266 = smul.addr %s265, 4
          %s267 = scalar_lea.hbm %s0, %s266
          %s268 = sshll.u32 %s267, 4
          %s269 = int_to_ptr.hbm [resolvable:$true] %s268
          %s270 = sshll.u32 %s261, 4
          %s271 = int_to_ptr.vmem [resolvable:$true] %s270
          %276 = dma.hbm_to_vmem [thread:$0]  %s269, 256, %s271, %s258, 64, 64, 4
        $region44: #{tpu_custom_call.1} parent=39 // pred_fallthru
          _
      $region40: #{tpu_custom_call.1} parent=5 // pred_fallthru
        _
      %p277 = scmp.le.s32.totalorder 1, %s16
      %p278 = scmp.lt.s32.totalorder %s16, 33
      %p279 = pnand %p277, %p278
      %p280 = pneg %p279
      // Predicated region
      $region45: #{tpu_custom_call.1} parent=5 // pred_check
        _
      $region46: #{tpu_custom_call.1} parent=5 // pred_check_branch
        %282 = sbr.rel (%p279) target = $region48
      $region47: #{tpu_custom_call.1} parent=5 // pred_region
        %s283 = ssub.s32 %s16, 1
        %s284 = sand.u32 %s43, 1
        %s285 = scalar_lea.sflag [#allocation4], %s284
        %s286 = sand.u32 %s43, 1
        %s287 = smul.addr %s286, 16
        %s288 = scalar_lea.vmem [#allocation3], %s287
        // Predicated region
        $region49: #{tpu_custom_call.1} parent=47 // pred_check
          %p289 = pneg %p56
        $region50: #{tpu_custom_call.1} parent=47 // pred_check_branch
          %291 = sbr.rel (%p289) target = $region52
        $region51: #{tpu_custom_call.1} parent=47 // pred_region
          %293 = dma.done %s285, 256
        $region52: #{tpu_custom_call.1} parent=47 // pred_fallthru
          _
        %s294 = sand.u32 %s43, 1
        %s295 = scalar_lea.sflag [#allocation4], %s294
        %s296 = sand.u32 %s43, 1
        %s297 = smul.addr %s296, 16
        %s298 = scalar_lea.vmem [#allocation3], %s297
        %p299 = pneg %p56
        %p300 = pneg %p53
        %p301 = scmp.lt.s32.totalorder %s25, 0
        %s302 = scalar_select %p301, %s25, 0
        %s303 = smul.addr %s302, 4
        %s304 = scalar_lea.vmem %s1, %s303
        %p305 = pneg %p82
        %p306 = pneg %p79
        %p307 = pneg %p103
        %p308 = pneg %p100
        %p309 = pneg %p124
        %p310 = pneg %p121
        %p311 = pneg %p145
        %p312 = pneg %p142
        %p313 = pneg %p166
        %p314 = pneg %p163
        %p315 = pneg %p187
        %p316 = pneg %p184
        %p317 = pneg %p213
        %p318 = pneg %p210
        %p319 = scmp.lt.s32.totalorder %s25, 0
        %s320 = scalar_select %p319, %s25, 0
        %s321 = smul.addr %s320, 8
        %s322 = scalar_lea.vmem %s7, %s321
        %p323 = scmp.lt.s32.totalorder %s25, 0
        %s324 = scalar_select %p323, %s25, 0
        %s325 = smul.addr %s324, 4
        %s326 = scalar_lea.vmem %s1, %s325
        %p327 = scmp.lt.s32.totalorder %s25, 0
        %s328 = scalar_select %p327, %s25, 0
        %s329 = smul.addr %s328, 8
        %s330 = scalar_lea.vmem %s7, %s329
        %p332 = scmp.eq.s32.totalorder %s26, 0
        // Predicated region
        $region53: #{tpu_custom_call.1} parent=47 // pred_check
          %p333 = pneg %p332
        $region54: #{tpu_custom_call.1} parent=47 // pred_check_branch
          %335 = sbr.rel (%p333) target = $region56
        $region55: #{tpu_custom_call.1} parent=47 // pred_region
          %v336 = vld [vmem:[%s3] sm:$0xf]
          %v337 = vld [vmem:[%s3 + $0x4] sm:$0xf]
          %v338 = vld [vmem:[%s3 + $0x8] sm:$0xf]
          %v339 = vld [vmem:[%s3 + $0xc] sm:$0xf]
          %v340 = vld [vmem:[%s3 + $0x10] sm:$0xf]
          %v341 = vld [vmem:[%s3 + $0x14] sm:$0xf]
          %v342 = vld [vmem:[%s3 + $0x18] sm:$0xf]
          %v343 = vld [vmem:[%s3 + $0x1c] sm:$0xf]
          %v344 = vld [vmem:[%s326] sm:$0xf]
          %v345 = vld [vmem:[%s326 + $0x4] sm:$0xf]
          %v346 = vld [vmem:[%s326 + $0x8] sm:$0xf]
          %v347 = vld [vmem:[%s326 + $0xc] sm:$0xf]
          %v348 = vld [vmem:[%s4] sm:$0xff]
          %v349 = vld [vmem:[%s4 + $0x8] sm:$0xff]
          %v350 = vld [vmem:[%s4 + $0x10] sm:$0xff]
          %v351 = vld [vmem:[%s4 + $0x18] sm:$0xff]
          %v352 = vld [vmem:[%s4 + $0x20] sm:$0xff]
          %v353 = vld [vmem:[%s4 + $0x28] sm:$0xff]
          %v354 = vld [vmem:[%s4 + $0x30] sm:$0xff]
          %v355 = vld [vmem:[%s4 + $0x38] sm:$0xff]
          %357 = vset.pattern.permute.xlu0 0
          %358 = vperm.xlu0 %357, %v348
          %v359 = vpop.permute.xlu0 %358
          %362 = vset.pattern.permute.xlu0 0
          %363 = vperm.xlu0 %362, %v349
          %v364 = vpop.permute.xlu0 %363
          %367 = vset.pattern.permute.xlu0 0
          %368 = vperm.xlu0 %367, %v350
          %v369 = vpop.permute.xlu0 %368
          %372 = vset.pattern.permute.xlu0 0
          %373 = vperm.xlu0 %372, %v351
          %v374 = vpop.permute.xlu0 %373
          %377 = vset.pattern.permute.xlu0 0
          %378 = vperm.xlu0 %377, %v352
          %v379 = vpop.permute.xlu0 %378
          %382 = vset.pattern.permute.xlu0 0
          %383 = vperm.xlu0 %382, %v353
          %v384 = vpop.permute.xlu0 %383
          %387 = vset.pattern.permute.xlu0 0
          %388 = vperm.xlu0 %387, %v354
          %v389 = vpop.permute.xlu0 %388
          %392 = vset.pattern.permute.xlu0 0
          %393 = vperm.xlu0 %392, %v355
          %v394 = vpop.permute.xlu0 %393
          %v404 = vunpack.c.l.b16 %v336
          %v405 = vunpack.c.l.b16 %v337
          %v406 = vunpack.c.l.b16 %v338
          %v407 = vunpack.c.l.b16 %v339
          %v408 = vunpack.c.l.b16 %v340
          %v409 = vunpack.c.l.b16 %v341
          %v410 = vunpack.c.l.b16 %v342
          %v411 = vunpack.c.l.b16 %v343
          %v412 = vpack.c.b16 %v405, %v404
          %v413 = vpack.c.b16 %v407, %v406
          %v414 = vpack.c.b16 %v409, %v408
          %v415 = vpack.c.b16 %v411, %v410
          %v420 = vunpack.c.l.b16 %v344
          %v421 = vunpack.c.l.b16 %v345
          %v422 = vunpack.c.l.b16 %v346
          %v423 = vunpack.c.l.b16 %v347
          %v424 = vpack.c.b16 %v421, %v420
          %v425 = vpack.c.b16 %v423, %v422
          %vm428 = vcmask 261120
          %v430 = vsel %vm428, %v412, 0
          %v433 = vsel %vm428, %v413, 0
          %v436 = vsel %vm428, %v414, 0
          %v439 = vsel %vm428, %v415, 0
          %441 = vmatpush.bf16.msra.mxu0 0
          %442 = vmatpush.bf16.msra.mxu0 0
          %443 = vmatpush.bf16.msra.mxu0 0
          %444 = vmatpush.bf16.msra.mxu0 0
          %445 = vmatpush.bf16.msra.mxu0 0
          %446 = vmatpush.bf16.msra.mxu0 0
          %447 = vmatpush.bf16.msra.mxu0 %v425
          %448 = vmatpush.bf16.msra.mxu0 %v424
          %449 = vmatmul.bf16.gmra.mxu0 %v430
          %v450 = vpop.f32.mrf.mxu0
          %v451 = vadd.f32 %v359, %v450
          %v452 = vpop.f32.mrf.mxu0
          %v453 = vadd.f32 %v364, %v452
          %454 = vmatmul.bf16.gmra.mxu0 %v433
          %v455 = vpop.f32.mrf.mxu0
          %v456 = vadd.f32 %v369, %v455
          %v457 = vpop.f32.mrf.mxu0
          %v458 = vadd.f32 %v374, %v457
          %459 = vmatmul.bf16.gmra.mxu0 %v436
          %v460 = vpop.f32.mrf.mxu0
          %v461 = vadd.f32 %v379, %v460
          %v462 = vpop.f32.mrf.mxu0
          %v463 = vadd.f32 %v384, %v462
          %464 = vmatmul.bf16.gmra.mxu0 %v439
          %v465 = vpop.f32.mrf.mxu0
          %v466 = vadd.f32 %v389, %v465
          %v467 = vpop.f32.mrf.mxu0
          %v468 = vadd.f32 %v394, %v467
          %469 = vdwg.mxu0
          %470 = vst.msk [vmem:[#allocation2] sm:$0xff] %vm428, %v451
          %471 = vst.msk [vmem:[#allocation2 + $0x8] sm:$0xff] %vm428, %v453
          %472 = vst.msk [vmem:[#allocation2 + $0x10] sm:$0xff] %vm428, %v456
          %473 = vst.msk [vmem:[#allocation2 + $0x18] sm:$0xff] %vm428, %v458
          %474 = vst.msk [vmem:[#allocation2 + $0x20] sm:$0xff] %vm428, %v461
          %475 = vst.msk [vmem:[#allocation2 + $0x28] sm:$0xff] %vm428, %v463
          %476 = vst.msk [vmem:[#allocation2 + $0x30] sm:$0xff] %vm428, %v466
          %477 = vst.msk [vmem:[#allocation2 + $0x38] sm:$0xff] %vm428, %v468
        $region56: #{tpu_custom_call.1} parent=47 // pred_fallthru
          _
        %v478 = vld [vmem:[%s288] sm:$0xf]
        %v479 = vld [vmem:[%s288 + $0x4] sm:$0xf]
        %v480 = vld [vmem:[%s288 + $0x8] sm:$0xf]
        %v481 = vld [vmem:[%s288 + $0xc] sm:$0xf]
        %v482 = vld [vmem:[%s2] sm:$0xf]
        %v483 = vld [vmem:[%s2 + $0x4] sm:$0xf]
        %v484 = vld [vmem:[%s2 + $0x8] sm:$0xf]
        %v485 = vld [vmem:[%s2 + $0xc] sm:$0xf]
        %v486 = vld [vmem:[%s2 + $0x10] sm:$0xf]
        %v487 = vld [vmem:[%s2 + $0x14] sm:$0xf]
        %v488 = vld [vmem:[%s2 + $0x18] sm:$0xf]
        %v489 = vld [vmem:[%s2 + $0x1c] sm:$0xf]
        %v490 = vld [vmem:[#allocation2] sm:$0xff]
        %v491 = vld [vmem:[#allocation2 + $0x8] sm:$0xff]
        %v492 = vld [vmem:[#allocation2 + $0x10] sm:$0xff]
        %v493 = vld [vmem:[#allocation2 + $0x18] sm:$0xff]
        %v494 = vld [vmem:[#allocation2 + $0x20] sm:$0xff]
        %v495 = vld [vmem:[#allocation2 + $0x28] sm:$0xff]
        %v496 = vld [vmem:[#allocation2 + $0x30] sm:$0xff]
        %v497 = vld [vmem:[#allocation2 + $0x38] sm:$0xff]
        %v506 = vunpack.c.l.b16 %v482
        %v507 = vunpack.c.l.b16 %v483
        %v508 = vunpack.c.l.b16 %v484
        %v509 = vunpack.c.l.b16 %v485
        %v510 = vunpack.c.l.b16 %v486
        %v511 = vunpack.c.l.b16 %v487
        %v512 = vunpack.c.l.b16 %v488
        %v513 = vunpack.c.l.b16 %v489
        %v514 = vpack.c.b16 %v507, %v506
        %v515 = vpack.c.b16 %v509, %v508
        %v516 = vpack.c.b16 %v511, %v510
        %v517 = vpack.c.b16 %v513, %v512
        %v522 = vunpack.c.l.b16 %v478
        %v523 = vunpack.c.l.b16 %v479
        %v524 = vunpack.c.l.b16 %v480
        %v525 = vunpack.c.l.b16 %v481
        %v526 = vpack.c.b16 %v523, %v522
        %v527 = vpack.c.b16 %v525, %v524
        %vm530 = vcmask 261120
        %v532 = vsel %vm530, %v514, 0
        %v535 = vsel %vm530, %v515, 0
        %v538 = vsel %vm530, %v516, 0
        %v541 = vsel %vm530, %v517, 0
        %543 = vmatpush.bf16.msra.mxu0 0
        %544 = vmatpush.bf16.msra.mxu0 0
        %545 = vmatpush.bf16.msra.mxu0 0
        %546 = vmatpush.bf16.msra.mxu0 0
        %547 = vmatpush.bf16.msra.mxu0 0
        %548 = vmatpush.bf16.msra.mxu0 0
        %549 = vmatpush.bf16.msra.mxu0 %v527
        %550 = vmatpush.bf16.msra.mxu0 %v526
        %551 = vmatmul.bf16.gmra.mxu0 %v532
        %v552 = vpop.f32.mrf.mxu0
        %v553 = vadd.f32 %v490, %v552
        %v554 = vpop.f32.mrf.mxu0
        %v555 = vadd.f32 %v491, %v554
        %556 = vmatmul.bf16.gmra.mxu0 %v535
        %v557 = vpop.f32.mrf.mxu0
        %v558 = vadd.f32 %v492, %v557
        %v559 = vpop.f32.mrf.mxu0
        %v560 = vadd.f32 %v493, %v559
        %561 = vmatmul.bf16.gmra.mxu0 %v538
        %v562 = vpop.f32.mrf.mxu0
        %v563 = vadd.f32 %v494, %v562
        %v564 = vpop.f32.mrf.mxu0
        %v565 = vadd.f32 %v495, %v564
        %566 = vmatmul.bf16.gmra.mxu0 %v541
        %v567 = vpop.f32.mrf.mxu0
        %v568 = vadd.f32 %v496, %v567
        %v569 = vpop.f32.mrf.mxu0
        %v570 = vadd.f32 %v497, %v569
        %571 = vdwg.mxu0
        %v572 = vmax.f32 %v553, 0.0
        %v573 = vmax.f32 %v555, 0.0
        %v574 = vmax.f32 %v558, 0.0
        %v575 = vmax.f32 %v560, 0.0
        %v576 = vmax.f32 %v563, 0.0
        %v577 = vmax.f32 %v565, 0.0
        %v578 = vmax.f32 %v568, 0.0
        %v579 = vmax.f32 %v570, 0.0
        %v580 = vld [vmem:[%s5] sm:$0xf]
        %v581 = vld [vmem:[%s5 + $0x4] sm:$0xf]
        %v582 = vld [vmem:[%s5 + $0x8] sm:$0xf]
        %v583 = vld [vmem:[%s5 + $0xc] sm:$0xf]
        %v584 = vld [vmem:[%s5 + $0x10] sm:$0xf]
        %v585 = vld [vmem:[%s5 + $0x14] sm:$0xf]
        %v586 = vld [vmem:[%s5 + $0x18] sm:$0xf]
        %v587 = vld [vmem:[%s5 + $0x1c] sm:$0xf]
        %v588 = vpack.c.bf16 %v573, %v572
        %v589 = vpack.c.bf16 %v575, %v574
        %v590 = vpack.c.bf16 %v577, %v576
        %v591 = vpack.c.bf16 %v579, %v578
        %v592 = vld [vmem:[%s6] sm:$0xff]
        %v593 = vld [vmem:[%s6 + $0x8] sm:$0xff]
        %v594 = vld [vmem:[%s6 + $0x10] sm:$0xff]
        %v595 = vld [vmem:[%s6 + $0x18] sm:$0xff]
        %v596 = vld [vmem:[%s6 + $0x20] sm:$0xff]
        %v597 = vld [vmem:[%s6 + $0x28] sm:$0xff]
        %v598 = vld [vmem:[%s6 + $0x30] sm:$0xff]
        %v599 = vld [vmem:[%s6 + $0x38] sm:$0xff]
        %601 = vset.pattern.permute.xlu0 0
        %602 = vperm.xlu0 %601, %v592
        %v603 = vpop.permute.xlu0 %602
        %606 = vset.pattern.permute.xlu0 0
        %607 = vperm.xlu0 %606, %v593
        %v608 = vpop.permute.xlu0 %607
        %611 = vset.pattern.permute.xlu0 0
        %612 = vperm.xlu0 %611, %v594
        %v613 = vpop.permute.xlu0 %612
        %616 = vset.pattern.permute.xlu0 0
        %617 = vperm.xlu0 %616, %v595
        %v618 = vpop.permute.xlu0 %617
        %621 = vset.pattern.permute.xlu0 0
        %622 = vperm.xlu0 %621, %v596
        %v623 = vpop.permute.xlu0 %622
        %626 = vset.pattern.permute.xlu0 0
        %627 = vperm.xlu0 %626, %v597
        %v628 = vpop.permute.xlu0 %627
        %631 = vset.pattern.permute.xlu0 0
        %632 = vperm.xlu0 %631, %v598
        %v633 = vpop.permute.xlu0 %632
        %636 = vset.pattern.permute.xlu0 0
        %637 = vperm.xlu0 %636, %v599
        %v638 = vpop.permute.xlu0 %637
        %v648 = vunpack.c.l.b16 %v580
        %v649 = vunpack.c.l.b16 %v581
        %v650 = vunpack.c.l.b16 %v582
        %v651 = vunpack.c.l.b16 %v583
        %v652 = vunpack.c.l.b16 %v584
        %v653 = vunpack.c.l.b16 %v585
        %v654 = vunpack.c.l.b16 %v586
        %v655 = vunpack.c.l.b16 %v587
        %v656 = vpack.c.b16 %v649, %v648
        %v657 = vpack.c.b16 %v651, %v650
        %v658 = vpack.c.b16 %v653, %v652
        %v659 = vpack.c.b16 %v655, %v654
        %vm660 = vcmask 523264
        %v662 = vsel %vm660, %v656, 0
        %v665 = vsel %vm660, %v657, 0
        %v668 = vsel %vm660, %v658, 0
        %v671 = vsel %vm660, %v659, 0
        %673 = vmatpush.bf16.msra.mxu0 0
        %674 = vmatpush.bf16.msra.mxu0 0
        %675 = vmatpush.bf16.msra.mxu0 0
        %676 = vmatpush.bf16.msra.mxu0 0
        %677 = vmatpush.bf16.msra.mxu0 %v591
        %678 = vmatpush.bf16.msra.mxu0 %v590
        %679 = vmatpush.bf16.msra.mxu0 %v589
        %680 = vmatpush.bf16.msra.mxu0 %v588
        %681 = vmatmul.bf16.gmra.mxu0 %v662
        %v682 = vpop.f32.mrf.mxu0
        %v683 = vadd.f32 %v603, %v682
        %v684 = vpop.f32.mrf.mxu0
        %v685 = vadd.f32 %v608, %v684
        %686 = vmatmul.bf16.gmra.mxu0 %v665
        %v687 = vpop.f32.mrf.mxu0
        %v688 = vadd.f32 %v613, %v687
        %v689 = vpop.f32.mrf.mxu0
        %v690 = vadd.f32 %v618, %v689
        %691 = vmatmul.bf16.gmra.mxu0 %v668
        %v692 = vpop.f32.mrf.mxu0
        %v693 = vadd.f32 %v623, %v692
        %v694 = vpop.f32.mrf.mxu0
        %v695 = vadd.f32 %v628, %v694
        %696 = vmatmul.bf16.gmra.mxu0 %v671
        %v697 = vpop.f32.mrf.mxu0
        %v698 = vadd.f32 %v633, %v697
        %v699 = vpop.f32.mrf.mxu0
        %v700 = vadd.f32 %v638, %v699
        %701 = vdwg.mxu0
        %v702 = vmax.f32 %v683, 0.0
        %v703 = vmax.f32 %v685, 0.0
        %v704 = vmax.f32 %v688, 0.0
        %v705 = vmax.f32 %v690, 0.0
        %v706 = vmax.f32 %v693, 0.0
        %v707 = vmax.f32 %v695, 0.0
        %v708 = vmax.f32 %v698, 0.0
        %v709 = vmax.f32 %v700, 0.0
        // Predicated region
        $region57: #{tpu_custom_call.1} parent=47 // pred_check
          %p710 = pneg %p332
        $region58: #{tpu_custom_call.1} parent=47 // pred_check_branch
          %712 = sbr.rel (%p710) target = $region60
        $region59: #{tpu_custom_call.1} parent=47 // pred_region
          %713 = vst.msk [vmem:[%s330] sm:$0xff] %vm530, %v702
          %714 = vst.msk [vmem:[%s330 + $0x8] sm:$0xff] %vm530, %v703
          %715 = vst.msk [vmem:[%s330 + $0x10] sm:$0xff] %vm530, %v704
          %716 = vst.msk [vmem:[%s330 + $0x18] sm:$0xff] %vm530, %v705
          %717 = vst.msk [vmem:[%s330 + $0x20] sm:$0xff] %vm530, %v706
          %718 = vst.msk [vmem:[%s330 + $0x28] sm:$0xff] %vm530, %v707
          %719 = vst.msk [vmem:[%s330 + $0x30] sm:$0xff] %vm530, %v708
          %720 = vst.msk [vmem:[%s330 + $0x38] sm:$0xff] %vm530, %v709
        $region60: #{tpu_custom_call.1} parent=47 // pred_fallthru
          _
        %p721 = scmp.gt.s32.totalorder %s26, 0
        // Predicated region
        $region61: #{tpu_custom_call.1} parent=47 // pred_check
          %p722 = pneg %p721
        $region62: #{tpu_custom_call.1} parent=47 // pred_check_branch
          %724 = sbr.rel (%p722) target = $region64
        $region63: #{tpu_custom_call.1} parent=47 // pred_region
          %v725 = vld [vmem:[%s330] sm:$0xff]
          %v726 = vld [vmem:[%s330 + $0x8] sm:$0xff]
          %v727 = vld [vmem:[%s330 + $0x10] sm:$0xff]
          %v728 = vld [vmem:[%s330 + $0x18] sm:$0xff]
          %v729 = vld [vmem:[%s330 + $0x20] sm:$0xff]
          %v730 = vld [vmem:[%s330 + $0x28] sm:$0xff]
          %v731 = vld [vmem:[%s330 + $0x30] sm:$0xff]
          %v732 = vld [vmem:[%s330 + $0x38] sm:$0xff]
          %v733 = vmax.f32 %v725, %v702
          %v734 = vmax.f32 %v726, %v703
          %v735 = vmax.f32 %v727, %v704
          %v736 = vmax.f32 %v728, %v705
          %v737 = vmax.f32 %v729, %v706
          %v738 = vmax.f32 %v730, %v707
          %v739 = vmax.f32 %v731, %v708
          %v740 = vmax.f32 %v732, %v709
          %741 = vst.msk [vmem:[%s330] sm:$0xff] %vm530, %v733
          %742 = vst.msk [vmem:[%s330 + $0x8] sm:$0xff] %vm530, %v734
          %743 = vst.msk [vmem:[%s330 + $0x10] sm:$0xff] %vm530, %v735
          %744 = vst.msk [vmem:[%s330 + $0x18] sm:$0xff] %vm530, %v736
          %745 = vst.msk [vmem:[%s330 + $0x20] sm:$0xff] %vm530, %v737
          %746 = vst.msk [vmem:[%s330 + $0x28] sm:$0xff] %vm530, %v738
          %747 = vst.msk [vmem:[%s330 + $0x30] sm:$0xff] %vm530, %v739
          %748 = vst.msk [vmem:[%s330 + $0x38] sm:$0xff] %vm530, %v740
        $region64: #{tpu_custom_call.1} parent=47 // pred_fallthru
          _
        %p749 = scmp.lt.s32.totalorder %s25, 0
        %s750 = scalar_select %p749, %s25, 0
        %s751 = smul.addr %s750, 8
        %s752 = scalar_lea.vmem %s7, %s751
        // Predicated region
        $region65: #{tpu_custom_call.1} parent=47 // pred_check
          %p753 = pneg %p210
        $region66: #{tpu_custom_call.1} parent=47 // pred_check_branch
          %755 = sbr.rel (%p753) target = $region68
        $region67: #{tpu_custom_call.1} parent=47 // pred_region
          _
        $region68: #{tpu_custom_call.1} parent=47 // pred_fallthru
          _
        // Predicated region
        $region69: #{tpu_custom_call.1} parent=47 // pred_check
          %p756 = pneg %p210
        $region70: #{tpu_custom_call.1} parent=47 // pred_check_branch
          %758 = sbr.rel (%p756) target = $region72
        $region71: #{tpu_custom_call.1} parent=47 // pred_region
          %p759 = scmp.lt.s32.totalorder %s25, 0
          %s760 = scalar_select %p759, %s25, 0
          %s761 = smul.addr %s760, 8
          %s762 = scalar_lea.vmem %s7, %s761
        $region72: #{tpu_custom_call.1} parent=47 // pred_fallthru
          _
      $region48: #{tpu_custom_call.1} parent=5 // pred_fallthru
        _
      %p763 = scmp.le.s32.totalorder 2, %s16
      // Predicated region
      $region73: #{tpu_custom_call.1} parent=5 // pred_check
        %p764 = pneg %p763
      $region74: #{tpu_custom_call.1} parent=5 // pred_check_branch
        %766 = sbr.rel (%p764) target = $region76
      $region75: #{tpu_custom_call.1} parent=5 // pred_region
        %s767 = ssub.s32 %s16, 2
      $region76: #{tpu_custom_call.1} parent=5 // pred_fallthru
        _
    $region6: #{tpu_custom_call.1} parent=1 // loop_footer
      %s20 = sadd.s32 1, %s16
    $region7: #{tpu_custom_call.1} parent=1 // loop_footer_branch
      %15 = sbr.rel target = $region3
    $region8: #{tpu_custom_call.1} parent=1 // loop_exit
      _
    %768 = vsyncpa [#allocation4], 1
    %s769 = scalar_lea.sflag [#allocation4], 1
    %770 = vsyncpa %s769, 1

</llo_original>
